<compile_context>
chip_gen: v5e
topology: v5e:2x2
jax: 0.10.0
libtpu: 0.0.40
codegen_flags: <defaults>
</compile_context>

<pallas_src>
import functools

import jax
import jax.numpy as jnp
from jax import lax
from jax.experimental import pallas as pl
from jax.experimental.pallas import tpu as pltpu


LANE = 128
SUBLANE = 8


def _round_up(x, m):
    return ((x + m - 1) // m) * m


# ----------------------------- Pallas kernels --------------------------------
def _conv_mm_kernel(p_ref, w_ref, b_ref, out_ref, *, apply_relu):
    """out = [relu](patches @ w + b) for one M tile.

    p_ref   : (tm, KC)        im2col slab tile (KC = KH*KW*Cin)
    w_ref   : (KC, Cout_pad)  flattened weights (lane-dense, zero padded)
    b_ref   : (1, Cout_pad)   bias (f32, zero padded)
    out_ref : (tm, Cout_pad)  f32 output tile
    """
    acc = jnp.dot(p_ref[...], w_ref[...], preferred_element_type=jnp.float32)
    acc = acc + b_ref[...]
    if apply_relu:
        acc = jnp.maximum(acc, 0.0)
    out_ref[...] = acc.astype(out_ref.dtype)


def _conv_mm_res_kernel(p_ref, w_ref, b_ref, res_ref, out_ref, *, apply_relu):
    """Same as above but with the residual add fused into the epilogue."""
    acc = jnp.dot(p_ref[...], w_ref[...], preferred_element_type=jnp.float32)
    acc = acc + b_ref[...]
    if apply_relu:
        acc = jnp.maximum(acc, 0.0)
    out_ref[...] = (acc + res_ref[...]).astype(out_ref.dtype)


# ----------------------------- conv wrapper -----------------------------------
def conv2d_pallas(x_nhwc, w_hwio, b, *, stride=1, padding=0, relu=False,
                  residual=None, tile_m=512, compute_dtype=jnp.float32):
    """2D convolution (NHWC / HWIO) as one tiled [M, K*Cin] x [K*Cin, Cout] matmul.

    Patch extraction / padding / reshapes are glue in plain JAX; the matmul plus
    bias/ReLU/residual epilogue runs inside the Pallas kernel on the MXU.
    """
    N, H, W, Cin = x_nhwc.shape
    KH, KW, _, Cout = w_hwio.shape

    x_pad = jnp.pad(
        x_nhwc, ((0, 0), (padding, padding), (padding, padding), (0, 0))
    )
    H_out = (H + 2 * padding - KH) // stride + 1
    W_out = (W + 2 * padding - KW) // stride + 1
    M = N * H_out * W_out
    KC = KH * KW * Cin

    # im2col slab, columns ordered (kh, kw, cin) to match w_hwio.reshape(KC, Cout).
    slabs = []
    for kh in range(KH):
        for kw in range(KW):
            slab = x_pad[
                :,
                kh: kh + stride * H_out: stride,
                kw: kw + stride * W_out: stride,
                :,
            ]
            slabs.append(slab.reshape(M, Cin))
    patches = jnp.concatenate(slabs, axis=1).astype(compute_dtype)   # (M, KC)
    w_flat = w_hwio.reshape(KC, Cout).astype(compute_dtype)          # (KC, Cout)

    # Lane-dense output: pad Cout to a multiple of 128. Tile & pad M.
    Cout_p = _round_up(Cout, LANE)
    tm = min(tile_m, _round_up(M, SUBLANE))
    M_p = _round_up(M, tm)

    if M_p != M:
        patches = jnp.pad(patches, ((0, M_p - M), (0, 0)))
    if Cout_p != Cout:
        w_flat = jnp.pad(w_flat, ((0, 0), (0, Cout_p - Cout)))
    b2 = jnp.pad(b.astype(jnp.float32), (0, Cout_p - Cout)).reshape(1, Cout_p)

    in_specs = [
        pl.BlockSpec((tm, KC), lambda i: (i, 0)),         # patches tile
        pl.BlockSpec((KC, Cout_p), lambda i: (0, 0)),     # weights (resident)
        pl.BlockSpec((1, Cout_p), lambda i: (0, 0)),      # bias    (resident)
    ]
    args = [patches, w_flat, b2]

    if residual is None:
        kernel = functools.partial(_conv_mm_kernel, apply_relu=relu)
    else:
        res = residual.reshape(M, Cout).astype(jnp.float32)
        res = jnp.pad(res, ((0, M_p - M), (0, Cout_p - Cout)))
        in_specs.append(pl.BlockSpec((tm, Cout_p), lambda i: (i, 0)))
        args.append(res)
        kernel = functools.partial(_conv_mm_res_kernel, apply_relu=relu)

    out = pl.pallas_call(
        kernel,
        out_shape=jax.ShapeDtypeStruct((M_p, Cout_p), jnp.float32),
        grid_spec=pltpu.PrefetchScalarGridSpec(
            num_scalar_prefetch=0,
            grid=(M_p // tm,),
            in_specs=in_specs,
            out_specs=pl.BlockSpec((tm, Cout_p), lambda i: (i, 0)),
        ),
        compiler_params=pltpu.CompilerParams(
            dimension_semantics=("parallel",),   # shards M tiles across TCs on v7x
        ),
    )(*args)

    return out[:M, :Cout].reshape(N, H_out, W_out, Cout)


# ----------------------------- ConvBlock wrapper -----------------------------
def conv_block_forward(x_nchw, params, *, in_dim, out_dim, kernel_size, stride, padding):
    """Exact semantics of the PyTorch ConvBlock.forward (NCHW in, NCHW out)."""
    del kernel_size  # implied by weight shapes
    x = jnp.transpose(x_nchw, (0, 2, 3, 1))  # NCHW -> NHWC

    h = conv2d_pallas(
        x, params["w1"], params["b1"], stride=stride, padding=padding, relu=True
    )

    if in_dim == out_dim:
        identity = x
    else:
        identity = conv2d_pallas(
            x, params["wm"], params["bm"], stride=stride, padding=0, relu=False
        )

    # conv2 with the residual add fused into the kernel epilogue
    out = conv2d_pallas(
        h, params["w2"], params["b2"], stride=1, padding=padding, relu=False,
        residual=identity,
    )
    return jnp.transpose(out, (0, 3, 1, 2))  # NHWC -> NCHW


# ----------------------------- reference (lax) --------------------------------
def _conv_ref(x_nchw, w_oihw, b, stride, padding):
    y = lax.conv_general_dilated(
        x_nchw, w_oihw,
        window_strides=(stride, stride),
        padding=((padding, padding), (padding, padding)),
        dimension_numbers=("NCHW", "OIHW", "NCHW"),
    )
    return y + b.reshape(1, -1, 1, 1)


def conv_block_ref(x, p_oihw, *, in_dim, out_dim, stride, padding):
    h = jnp.maximum(_conv_ref(x, p_oihw["w1"], p_oihw["b1"], stride, padding), 0.0)
    out = _conv_ref(h, p_oihw["w2"], p_oihw["b2"], 1, padding)
    if in_dim == out_dim:
        identity = x
    else:
        identity = _conv_ref(x, p_oihw["wm"], p_oihw["bm"], stride, 0)
    return out + identity


# ----------------------------- main ------------------------------------------
if __name__ == "__main__":
    # Small, PyTorch-consistent config.
    N, in_dim, Hs, Ws = 2, 4, 16, 16
    out_dim, kernel_size, stride, padding = 8, 3, 1, 1

    key = jax.random.PRNGKey(0)
    k_x, k_w1, k_b1, k_w2, k_b2, k_wm, k_bm = jax.random.split(key, 7)

    x = jax.random.normal(k_x, (N, in_dim, Hs, Ws), jnp.float32)

    # Deterministic parameter init (OIHW like PyTorch, scaled normal).
    w1_oihw = 0.1 * jax.random.normal(k_w1, (out_dim, in_dim, kernel_size, kernel_size), jnp.float32)
    b1 = 0.1 * jax.random.normal(k_b1, (out_dim,), jnp.float32)
    w2_oihw = 0.1 * jax.random.normal(k_w2, (out_dim, out_dim, kernel_size, kernel_size), jnp.float32)
    b2 = 0.1 * jax.random.normal(k_b2, (out_dim,), jnp.float32)
    wm_oihw = 0.1 * jax.random.normal(k_wm, (out_dim, in_dim, 1, 1), jnp.float32)
    bm = 0.1 * jax.random.normal(k_bm, (out_dim,), jnp.float32)

    # HWIO weights for the Pallas path.
    params = {
        "w1": jnp.transpose(w1_oihw, (2, 3, 1, 0)), "b1": b1,
        "w2": jnp.transpose(w2_oihw, (2, 3, 1, 0)), "b2": b2,
        "wm": jnp.transpose(wm_oihw, (2, 3, 1, 0)), "bm": bm,
    }
    params_ref = {"w1": w1_oihw, "b1": b1, "w2": w2_oihw, "b2": b2, "wm": wm_oihw, "bm": bm}

    out = conv_block_forward(
        x, params,
        in_dim=in_dim, out_dim=out_dim,
        kernel_size=kernel_size, stride=stride, padding=padding,
    )
    out = jax.block_until_ready(out)

    ref = conv_block_ref(x, params_ref, in_dim=in_dim, out_dim=out_dim,
                         stride=stride, padding=padding)
    ref = jax.block_until_ready(ref)

    assert out.shape == ref.shape == (N, out_dim, Hs, Ws)
    assert jnp.allclose(out, ref, atol=1e-4, rtol=1e-4), float(jnp.max(jnp.abs(out - ref)))

    print("KERNEL_OK")
</pallas_src>

<mosaic_0001>
module attributes {stable_mosaic.version = 11 : i64} {
  func.func @_conv_mm_kernel(%arg0: i32, %arg1: memref<512x36xf32, #tpu.memory_space<vmem>>, %arg2: memref<36x128xf32, #tpu.memory_space<vmem>>, %arg3: memref<1x128xf32, #tpu.memory_space<vmem>>, %arg4: memref<512x128xf32, #tpu.memory_space<vmem>>) attributes {dimension_semantics = [#tpu.dimension_semantics<parallel>], iteration_bounds = array<i64: 1>, scalar_prefetch = 0 : i64, scratch_operands = 0 : i64, tpu.core_type = #tpu.core_type<tc>, window_params = [{transform_indices = @transform_0, window_bounds = array<i64: 512, 36>}, {pipeline_mode = #tpu.pipeline_mode<synchronous>, transform_indices = @transform_1, window_bounds = array<i64: 36, 128>}, {pipeline_mode = #tpu.pipeline_mode<synchronous>, transform_indices = @transform_2, window_bounds = array<i64: 1, 128>}, {transform_indices = @transform_3, window_bounds = array<i64: 512, 128>}]} {
    %c0 = arith.constant 0 : index
    %c0_0 = arith.constant 0 : index
    %0 = vector.load %arg1[%c0, %c0_0] : memref<512x36xf32, #tpu.memory_space<vmem>>, vector<512x36xf32>
    %c0_1 = arith.constant 0 : index
    %c0_2 = arith.constant 0 : index
    %1 = vector.load %arg2[%c0_1, %c0_2] : memref<36x128xf32, #tpu.memory_space<vmem>>, vector<36x128xf32>
    %cst = arith.constant dense<0.000000e+00> : vector<512x128xf32>
    %2 = tpu.matmul %0, %1, %cst {dimension_numbers = #tpu.dot_dimension_numbers<[1], [0], [0], [1], [0, 0, 1, 1], [], []>} : vector<512x36xf32>, vector<36x128xf32>, vector<512x128xf32> -> vector<512x128xf32>
    %c0_3 = arith.constant 0 : index
    %c0_4 = arith.constant 0 : index
    %3 = vector.load %arg3[%c0_3, %c0_4] : memref<1x128xf32, #tpu.memory_space<vmem>>, vector<1x128xf32>
    %4 = vector.broadcast %3 : vector<1x128xf32> to vector<512x128xf32>
    %5 = arith.addf %2, %4 : vector<512x128xf32>
    %cst_5 = arith.constant 0.000000e+00 : f32
    %6 = vector.broadcast %cst_5 : f32 to vector<512x128xf32>
    %7 = arith.maximumf %5, %6 : vector<512x128xf32>
    %c0_6 = arith.constant 0 : index
    %c0_7 = arith.constant 0 : index
    %8 = vector.load %arg4[%c0_6, %c0_7] : memref<512x128xf32, #tpu.memory_space<vmem>>, vector<512x128xf32>
    tpu.vector_store %arg4[%c0_6, %c0_7], %7 {strides = array<i32>} : memref<512x128xf32, #tpu.memory_space<vmem>>, vector<512x128xf32>,
    return
  }
  func.func @transform_0(%arg0: i32) -> (i32, i32) {
    %c0_i32 = arith.constant 0 : i32
    %c0_i32_0 = arith.constant 0 : i32
    return %arg0, %c0_i32 : i32, i32
  }
  func.func @transform_1(%arg0: i32) -> (i32, i32) {
    %c0_i32 = arith.constant 0 : i32
    %c0_i32_0 = arith.constant 0 : i32
    %c0_i32_1 = arith.constant 0 : i32
    return %c0_i32, %c0_i32_0 : i32, i32
  }
  func.func @transform_2(%arg0: i32) -> (i32, i32) {
    %c0_i32 = arith.constant 0 : i32
    %c0_i32_0 = arith.constant 0 : i32
    %c0_i32_1 = arith.constant 0 : i32
    return %c0_i32, %c0_i32_0 : i32, i32
  }
  func.func @transform_3(%arg0: i32) -> (i32, i32) {
    %c0_i32 = arith.constant 0 : i32
    %c0_i32_0 = arith.constant 0 : i32
    return %arg0, %c0_i32 : i32, i32
  }
}

</mosaic_0001>

<llo_original>
// kernel: tpu_custom_call.1
$region0: #{tpu_custom_call.1}
  #allocation0 [shape = 'u32[]', space=smem, size = 0x4, offset = 0x4, fixed_abs, tag = 'smem constant byte address 0x4 - core index']
  #allocation1 [shape = 'u32[72,128]{1,0:T(1,128)}', space=vmem, size = 0x9000, scoped, tag = 'internal scratch']
  %s0 = inlined_call_operand.vmem [shape: f32[512,36], index: 0, kind: input, shape index: {}]
  %s1 = inlined_call_operand.vmem [shape: f32[36,128], index: 1, kind: input, shape index: {}]
  %s2 = inlined_call_operand.vmem [shape: f32[1,128], index: 2, kind: input, shape index: {}]
  %s3 = inlined_call_operand.hbm [shape: f32[512,128], index: 3, kind: output, shape index: {}]
  %s4 = sld [smem:[#allocation0]]
  $region22: #{tpu_custom_call.1} parent=0
    _
  %s6 = ssub.s32 1, %s4
  %s7 = scalar_select 0, %s6, %s4
  $region1: #{tpu_custom_call.1} parent=0
    #allocation2 [shape = 'u8[262144]{0}', space=vmem, size = 0x40000, scoped, tag = 'output window, operand 0, single buffered']
    #allocation3 [shape = 's32[1]{0}', space=sflag, size = 0x4, scoped, tag = 'scoped memory for tpu_custom_call.1']
    %8 = vsyncpa [#allocation3], 0
    // Predicated region
    $region2: #{tpu_custom_call.1} parent=1 // pred_check
      _
    $region3: #{tpu_custom_call.1} parent=1 // pred_check_branch
      %10 = sbr.rel (0) target = $region5
    $region4: #{tpu_custom_call.1} parent=1 // pred_region
      _
    $region5: #{tpu_custom_call.1} parent=1 // pred_fallthru
      _
    // Predicated region
    $region6: #{tpu_custom_call.1} parent=1 // pred_check
      _
    $region7: #{tpu_custom_call.1} parent=1 // pred_check_branch
      %12 = sbr.rel (0) target = $region9
    $region8: #{tpu_custom_call.1} parent=1 // pred_region
      _
    $region9: #{tpu_custom_call.1} parent=1 // pred_fallthru
      _
    // Predicated region
    $region10: #{tpu_custom_call.1} parent=1 // pred_check
      _
    $region11: #{tpu_custom_call.1} parent=1 // pred_check_branch
      %14 = sbr.rel (0) target = $region13
    $region12: #{tpu_custom_call.1} parent=1 // pred_region
      _
    $region13: #{tpu_custom_call.1} parent=1 // pred_fallthru
      _
    %v15 = vld [vmem:[%s0] sm:$0xff]
    %v16 = vld [vmem:[%s0 + $0x8] sm:$0xff]
    %v17 = vld [vmem:[%s0 + $0x10] sm:$0xff]
    %v18 = vld [vmem:[%s0 + $0x18] sm:$0xff]
    %v19 = vld [vmem:[%s0 + $0x20] sm:$0xff]
    %v20 = vld [vmem:[%s0 + $0x28] sm:$0xff]
    %v21 = vld [vmem:[%s0 + $0x30] sm:$0xff]
    %v22 = vld [vmem:[%s0 + $0x38] sm:$0xff]
    %v23 = vld [vmem:[%s0 + $0x40] sm:$0xff]
    %v24 = vld [vmem:[%s0 + $0x48] sm:$0xff]
    %v25 = vld [vmem:[%s0 + $0x50] sm:$0xff]
    %v26 = vld [vmem:[%s0 + $0x58] sm:$0xff]
    %v27 = vld [vmem:[%s0 + $0x60] sm:$0xff]
    %v28 = vld [vmem:[%s0 + $0x68] sm:$0xff]
    %v29 = vld [vmem:[%s0 + $0x70] sm:$0xff]
    %v30 = vld [vmem:[%s0 + $0x78] sm:$0xff]
    %v31 = vld [vmem:[%s0 + $0x80] sm:$0xff]
    %v32 = vld [vmem:[%s0 + $0x88] sm:$0xff]
    %v33 = vld [vmem:[%s0 + $0x90] sm:$0xff]
    %v34 = vld [vmem:[%s0 + $0x98] sm:$0xff]
    %v35 = vld [vmem:[%s0 + $0xa0] sm:$0xff]
    %v36 = vld [vmem:[%s0 + $0xa8] sm:$0xff]
    %v37 = vld [vmem:[%s0 + $0xb0] sm:$0xff]
    %v38 = vld [vmem:[%s0 + $0xb8] sm:$0xff]
    %v39 = vld [vmem:[%s0 + $0xc0] sm:$0xff]
    %v40 = vld [vmem:[%s0 + $0xc8] sm:$0xff]
    %v41 = vld [vmem:[%s0 + $0xd0] sm:$0xff]
    %v42 = vld [vmem:[%s0 + $0xd8] sm:$0xff]
    %v43 = vld [vmem:[%s0 + $0xe0] sm:$0xff]
    %v44 = vld [vmem:[%s0 + $0xe8] sm:$0xff]
    %v45 = vld [vmem:[%s0 + $0xf0] sm:$0xff]
    %v46 = vld [vmem:[%s0 + $0xf8] sm:$0xff]
    %v47 = vld [vmem:[%s0 + $0x100] sm:$0xff]
    %v48 = vld [vmem:[%s0 + $0x108] sm:$0xff]
    %v49 = vld [vmem:[%s0 + $0x110] sm:$0xff]
    %v50 = vld [vmem:[%s0 + $0x118] sm:$0xff]
    %v51 = vld [vmem:[%s0 + $0x120] sm:$0xff]
    %v52 = vld [vmem:[%s0 + $0x128] sm:$0xff]
    %v53 = vld [vmem:[%s0 + $0x130] sm:$0xff]
    %v54 = vld [vmem:[%s0 + $0x138] sm:$0xff]
    %v55 = vld [vmem:[%s0 + $0x140] sm:$0xff]
    %v56 = vld [vmem:[%s0 + $0x148] sm:$0xff]
    %v57 = vld [vmem:[%s0 + $0x150] sm:$0xff]
    %v58 = vld [vmem:[%s0 + $0x158] sm:$0xff]
    %v59 = vld [vmem:[%s0 + $0x160] sm:$0xff]
    %v60 = vld [vmem:[%s0 + $0x168] sm:$0xff]
    %v61 = vld [vmem:[%s0 + $0x170] sm:$0xff]
    %v62 = vld [vmem:[%s0 + $0x178] sm:$0xff]
    %v63 = vld [vmem:[%s0 + $0x180] sm:$0xff]
    %v64 = vld [vmem:[%s0 + $0x188] sm:$0xff]
    %v65 = vld [vmem:[%s0 + $0x190] sm:$0xff]
    %v66 = vld [vmem:[%s0 + $0x198] sm:$0xff]
    %v67 = vld [vmem:[%s0 + $0x1a0] sm:$0xff]
    %v68 = vld [vmem:[%s0 + $0x1a8] sm:$0xff]
    %v69 = vld [vmem:[%s0 + $0x1b0] sm:$0xff]
    %v70 = vld [vmem:[%s0 + $0x1b8] sm:$0xff]
    %v71 = vld [vmem:[%s0 + $0x1c0] sm:$0xff]
    %v72 = vld [vmem:[%s0 + $0x1c8] sm:$0xff]
    %v73 = vld [vmem:[%s0 + $0x1d0] sm:$0xff]
    %v74 = vld [vmem:[%s0 + $0x1d8] sm:$0xff]
    %v75 = vld [vmem:[%s0 + $0x1e0] sm:$0xff]
    %v76 = vld [vmem:[%s0 + $0x1e8] sm:$0xff]
    %v77 = vld [vmem:[%s0 + $0x1f0] sm:$0xff]
    %v78 = vld [vmem:[%s0 + $0x1f8] sm:$0xff]
    %v79 = vld [vmem:[%s1] sm:$0xff]
    %v80 = vld [vmem:[%s1 + $0x8] sm:$0xff]
    %v81 = vld [vmem:[%s1 + $0x10] sm:$0xff]
    %v82 = vld [vmem:[%s1 + $0x18] sm:$0xff]
    %v83 = vld [vmem:[%s1 + $0x20] sm:$0xf]
    %v84 = vld [vmem:[%s2] sm:$0x1]
    %v86 = vperm.slane %v84, 0
    %vm88 = vcmask 293888
    %v90 = vsel %vm88, %v15, 0
    %v93 = vsel %vm88, %v16, 0
    %v96 = vsel %vm88, %v17, 0
    %v99 = vsel %vm88, %v18, 0
    %v102 = vsel %vm88, %v19, 0
    %v105 = vsel %vm88, %v20, 0
    %v108 = vsel %vm88, %v21, 0
    %v111 = vsel %vm88, %v22, 0
    %v114 = vsel %vm88, %v23, 0
    %v117 = vsel %vm88, %v24, 0
    %v120 = vsel %vm88, %v25, 0
    %v123 = vsel %vm88, %v26, 0
    %v126 = vsel %vm88, %v27, 0
    %v129 = vsel %vm88, %v28, 0
    %v132 = vsel %vm88, %v29, 0
    %v135 = vsel %vm88, %v30, 0
    %v138 = vsel %vm88, %v31, 0
    %v141 = vsel %vm88, %v32, 0
    %v144 = vsel %vm88, %v33, 0
    %v147 = vsel %vm88, %v34, 0
    %v150 = vsel %vm88, %v35, 0
    %v153 = vsel %vm88, %v36, 0
    %v156 = vsel %vm88, %v37, 0
    %v159 = vsel %vm88, %v38, 0
    %v162 = vsel %vm88, %v39, 0
    %v165 = vsel %vm88, %v40, 0
    %v168 = vsel %vm88, %v41, 0
    %v171 = vsel %vm88, %v42, 0
    %v174 = vsel %vm88, %v43, 0
    %v177 = vsel %vm88, %v44, 0
    %v180 = vsel %vm88, %v45, 0
    %v183 = vsel %vm88, %v46, 0
    %v186 = vsel %vm88, %v47, 0
    %v189 = vsel %vm88, %v48, 0
    %v192 = vsel %vm88, %v49, 0
    %v195 = vsel %vm88, %v50, 0
    %v198 = vsel %vm88, %v51, 0
    %v201 = vsel %vm88, %v52, 0
    %v204 = vsel %vm88, %v53, 0
    %v207 = vsel %vm88, %v54, 0
    %v210 = vsel %vm88, %v55, 0
    %v213 = vsel %vm88, %v56, 0
    %v216 = vsel %vm88, %v57, 0
    %v219 = vsel %vm88, %v58, 0
    %v222 = vsel %vm88, %v59, 0
    %v225 = vsel %vm88, %v60, 0
    %v228 = vsel %vm88, %v61, 0
    %v231 = vsel %vm88, %v62, 0
    %v234 = vsel %vm88, %v63, 0
    %v237 = vsel %vm88, %v64, 0
    %v240 = vsel %vm88, %v65, 0
    %v243 = vsel %vm88, %v66, 0
    %v246 = vsel %vm88, %v67, 0
    %v249 = vsel %vm88, %v68, 0
    %v252 = vsel %vm88, %v69, 0
    %v255 = vsel %vm88, %v70, 0
    %v258 = vsel %vm88, %v71, 0
    %v261 = vsel %vm88, %v72, 0
    %v264 = vsel %vm88, %v73, 0
    %v267 = vsel %vm88, %v74, 0
    %v270 = vsel %vm88, %v75, 0
    %v273 = vsel %vm88, %v76, 0
    %v276 = vsel %vm88, %v77, 0
    %v279 = vsel %vm88, %v78, 0
    %vm281 = vcmask 1043456
    %v283 = vsel %vm281, %v83, 0
    %285 = vmatpush.msra.mxu0 0.0
    %286 = vmatpush.msra.mxu0 0.0
    %287 = vmatpush.msra.mxu0 0.0
    %288 = vmatpush.msra.mxu0 0.0
    %289 = vmatpush.msra.mxu0 0.0
    %290 = vmatpush.msra.mxu0 0.0
    %291 = vmatpush.msra.mxu0 0.0
    %292 = vmatpush.msra.mxu0 0.0
    %293 = vmatpush.msra.mxu0 0.0
    %294 = vmatpush.msra.mxu0 0.0
    %295 = vmatpush.msra.mxu0 0.0
    %296 = vmatpush.msra.mxu0 %v283
    %297 = vmatpush.msra.mxu0 %v82
    %298 = vmatpush.msra.mxu0 %v81
    %299 = vmatpush.msra.mxu0 %v80
    %300 = vmatpush.msra.mxu0 %v79
    %301 = vmatmul.f32.gmra.mxu0 %v90
    %v302 = vpop.f32.mrf.mxu0
    %v303 = vadd.f32 %v86, %v302
    %304 = vmatmul.f32.gmra.mxu0 %v93
    %v305 = vpop.f32.mrf.mxu0
    %v306 = vadd.f32 %v86, %v305
    %307 = vmatmul.f32.gmra.mxu0 %v96
    %v308 = vpop.f32.mrf.mxu0
    %v309 = vadd.f32 %v86, %v308
    %310 = vmatmul.f32.gmra.mxu0 %v99
    %v311 = vpop.f32.mrf.mxu0
    %v312 = vadd.f32 %v86, %v311
    %313 = vmatmul.f32.gmra.mxu0 %v102
    %v314 = vpop.f32.mrf.mxu0
    %v315 = vadd.f32 %v86, %v314
    %316 = vmatmul.f32.gmra.mxu0 %v105
    %v317 = vpop.f32.mrf.mxu0
    %v318 = vadd.f32 %v86, %v317
    %319 = vmatmul.f32.gmra.mxu0 %v108
    %v320 = vpop.f32.mrf.mxu0
    %v321 = vadd.f32 %v86, %v320
    %322 = vmatmul.f32.gmra.mxu0 %v111
    %v323 = vpop.f32.mrf.mxu0
    %v324 = vadd.f32 %v86, %v323
    %325 = vmatmul.f32.gmra.mxu0 %v114
    %v326 = vpop.f32.mrf.mxu0
    %v327 = vadd.f32 %v86, %v326
    %328 = vmatmul.f32.gmra.mxu0 %v117
    %v329 = vpop.f32.mrf.mxu0
    %v330 = vadd.f32 %v86, %v329
    %331 = vmatmul.f32.gmra.mxu0 %v120
    %v332 = vpop.f32.mrf.mxu0
    %v333 = vadd.f32 %v86, %v332
    %334 = vmatmul.f32.gmra.mxu0 %v123
    %v335 = vpop.f32.mrf.mxu0
    %v336 = vadd.f32 %v86, %v335
    %337 = vmatmul.f32.gmra.mxu0 %v126
    %v338 = vpop.f32.mrf.mxu0
    %v339 = vadd.f32 %v86, %v338
    %340 = vmatmul.f32.gmra.mxu0 %v129
    %v341 = vpop.f32.mrf.mxu0
    %v342 = vadd.f32 %v86, %v341
    %343 = vmatmul.f32.gmra.mxu0 %v132
    %v344 = vpop.f32.mrf.mxu0
    %v345 = vadd.f32 %v86, %v344
    %346 = vmatmul.f32.gmra.mxu0 %v135
    %v347 = vpop.f32.mrf.mxu0
    %v348 = vadd.f32 %v86, %v347
    %349 = vmatmul.f32.gmra.mxu0 %v138
    %v350 = vpop.f32.mrf.mxu0
    %v351 = vadd.f32 %v86, %v350
    %352 = vmatmul.f32.gmra.mxu0 %v141
    %v353 = vpop.f32.mrf.mxu0
    %v354 = vadd.f32 %v86, %v353
    %355 = vmatmul.f32.gmra.mxu0 %v144
    %v356 = vpop.f32.mrf.mxu0
    %v357 = vadd.f32 %v86, %v356
    %358 = vmatmul.f32.gmra.mxu0 %v147
    %v359 = vpop.f32.mrf.mxu0
    %v360 = vadd.f32 %v86, %v359
    %361 = vmatmul.f32.gmra.mxu0 %v150
    %v362 = vpop.f32.mrf.mxu0
    %v363 = vadd.f32 %v86, %v362
    %364 = vmatmul.f32.gmra.mxu0 %v153
    %v365 = vpop.f32.mrf.mxu0
    %v366 = vadd.f32 %v86, %v365
    %367 = vmatmul.f32.gmra.mxu0 %v156
    %v368 = vpop.f32.mrf.mxu0
    %v369 = vadd.f32 %v86, %v368
    %370 = vmatmul.f32.gmra.mxu0 %v159
    %v371 = vpop.f32.mrf.mxu0
    %v372 = vadd.f32 %v86, %v371
    %373 = vmatmul.f32.gmra.mxu0 %v162
    %v374 = vpop.f32.mrf.mxu0
    %v375 = vadd.f32 %v86, %v374
    %376 = vmatmul.f32.gmra.mxu0 %v165
    %v377 = vpop.f32.mrf.mxu0
    %v378 = vadd.f32 %v86, %v377
    %379 = vmatmul.f32.gmra.mxu0 %v168
    %v380 = vpop.f32.mrf.mxu0
    %v381 = vadd.f32 %v86, %v380
    %382 = vmatmul.f32.gmra.mxu0 %v171
    %v383 = vpop.f32.mrf.mxu0
    %v384 = vadd.f32 %v86, %v383
    %385 = vmatmul.f32.gmra.mxu0 %v174
    %v386 = vpop.f32.mrf.mxu0
    %v387 = vadd.f32 %v86, %v386
    %388 = vmatmul.f32.gmra.mxu0 %v177
    %v389 = vpop.f32.mrf.mxu0
    %v390 = vadd.f32 %v86, %v389
    %391 = vmatmul.f32.gmra.mxu0 %v180
    %v392 = vpop.f32.mrf.mxu0
    %v393 = vadd.f32 %v86, %v392
    %394 = vmatmul.f32.gmra.mxu0 %v183
    %v395 = vpop.f32.mrf.mxu0
    %v396 = vadd.f32 %v86, %v395
    %397 = vmatmul.f32.gmra.mxu0 %v186
    %v398 = vpop.f32.mrf.mxu0
    %v399 = vadd.f32 %v86, %v398
    %400 = vmatmul.f32.gmra.mxu0 %v189
    %v401 = vpop.f32.mrf.mxu0
    %v402 = vadd.f32 %v86, %v401
    %403 = vmatmul.f32.gmra.mxu0 %v192
    %v404 = vpop.f32.mrf.mxu0
    %v405 = vadd.f32 %v86, %v404
    %406 = vmatmul.f32.gmra.mxu0 %v195
    %v407 = vpop.f32.mrf.mxu0
    %v408 = vadd.f32 %v86, %v407
    %409 = vmatmul.f32.gmra.mxu0 %v198
    %v410 = vpop.f32.mrf.mxu0
    %v411 = vadd.f32 %v86, %v410
    %412 = vmatmul.f32.gmra.mxu0 %v201
    %v413 = vpop.f32.mrf.mxu0
    %v414 = vadd.f32 %v86, %v413
    %415 = vmatmul.f32.gmra.mxu0 %v204
    %v416 = vpop.f32.mrf.mxu0
    %v417 = vadd.f32 %v86, %v416
    %418 = vmatmul.f32.gmra.mxu0 %v207
    %v419 = vpop.f32.mrf.mxu0
    %v420 = vadd.f32 %v86, %v419
    %421 = vmatmul.f32.gmra.mxu0 %v210
    %v422 = vpop.f32.mrf.mxu0
    %v423 = vadd.f32 %v86, %v422
    %424 = vmatmul.f32.gmra.mxu0 %v213
    %v425 = vpop.f32.mrf.mxu0
    %v426 = vadd.f32 %v86, %v425
    %427 = vmatmul.f32.gmra.mxu0 %v216
    %v428 = vpop.f32.mrf.mxu0
    %v429 = vadd.f32 %v86, %v428
    %430 = vmatmul.f32.gmra.mxu0 %v219
    %v431 = vpop.f32.mrf.mxu0
    %v432 = vadd.f32 %v86, %v431
    %433 = vmatmul.f32.gmra.mxu0 %v222
    %v434 = vpop.f32.mrf.mxu0
    %v435 = vadd.f32 %v86, %v434
    %436 = vmatmul.f32.gmra.mxu0 %v225
    %v437 = vpop.f32.mrf.mxu0
    %v438 = vadd.f32 %v86, %v437
    %439 = vmatmul.f32.gmra.mxu0 %v228
    %v440 = vpop.f32.mrf.mxu0
    %v441 = vadd.f32 %v86, %v440
    %442 = vmatmul.f32.gmra.mxu0 %v231
    %v443 = vpop.f32.mrf.mxu0
    %v444 = vadd.f32 %v86, %v443
    %445 = vmatmul.f32.gmra.mxu0 %v234
    %v446 = vpop.f32.mrf.mxu0
    %v447 = vadd.f32 %v86, %v446
    %448 = vmatmul.f32.gmra.mxu0 %v237
    %v449 = vpop.f32.mrf.mxu0
    %v450 = vadd.f32 %v86, %v449
    %451 = vmatmul.f32.gmra.mxu0 %v240
    %v452 = vpop.f32.mrf.mxu0
    %v453 = vadd.f32 %v86, %v452
    %454 = vmatmul.f32.gmra.mxu0 %v243
    %v455 = vpop.f32.mrf.mxu0
    %v456 = vadd.f32 %v86, %v455
    %457 = vmatmul.f32.gmra.mxu0 %v246
    %v458 = vpop.f32.mrf.mxu0
    %v459 = vadd.f32 %v86, %v458
    %460 = vmatmul.f32.gmra.mxu0 %v249
    %v461 = vpop.f32.mrf.mxu0
    %v462 = vadd.f32 %v86, %v461
    %463 = vmatmul.f32.gmra.mxu0 %v252
    %v464 = vpop.f32.mrf.mxu0
    %v465 = vadd.f32 %v86, %v464
    %466 = vmatmul.f32.gmra.mxu0 %v255
    %v467 = vpop.f32.mrf.mxu0
    %v468 = vadd.f32 %v86, %v467
    %469 = vmatmul.f32.gmra.mxu0 %v258
    %v470 = vpop.f32.mrf.mxu0
    %v471 = vadd.f32 %v86, %v470
    %472 = vmatmul.f32.gmra.mxu0 %v261
    %v473 = vpop.f32.mrf.mxu0
    %v474 = vadd.f32 %v86, %v473
    %475 = vmatmul.f32.gmra.mxu0 %v264
    %v476 = vpop.f32.mrf.mxu0
    %v477 = vadd.f32 %v86, %v476
    %478 = vmatmul.f32.gmra.mxu0 %v267
    %v479 = vpop.f32.mrf.mxu0
    %v480 = vadd.f32 %v86, %v479
    %481 = vmatmul.f32.gmra.mxu0 %v270
    %v482 = vpop.f32.mrf.mxu0
    %v483 = vadd.f32 %v86, %v482
    %484 = vmatmul.f32.gmra.mxu0 %v273
    %v485 = vpop.f32.mrf.mxu0
    %v486 = vadd.f32 %v86, %v485
    %487 = vmatmul.f32.gmra.mxu0 %v276
    %v488 = vpop.f32.mrf.mxu0
    %v489 = vadd.f32 %v86, %v488
    %490 = vmatmul.f32.gmra.mxu0 %v279
    %v491 = vpop.f32.mrf.mxu0
    %v492 = vadd.f32 %v86, %v491
    %493 = vdwg.mxu0
    %v494 = vmax.f32 %v303, 0.0
    %v495 = vmax.f32 %v306, 0.0
    %v496 = vmax.f32 %v309, 0.0
    %v497 = vmax.f32 %v312, 0.0
    %v498 = vmax.f32 %v315, 0.0
    %v499 = vmax.f32 %v318, 0.0
    %v500 = vmax.f32 %v321, 0.0
    %v501 = vmax.f32 %v324, 0.0
    %v502 = vmax.f32 %v327, 0.0
    %v503 = vmax.f32 %v330, 0.0
    %v504 = vmax.f32 %v333, 0.0
    %v505 = vmax.f32 %v336, 0.0
    %v506 = vmax.f32 %v339, 0.0
    %v507 = vmax.f32 %v342, 0.0
    %v508 = vmax.f32 %v345, 0.0
    %v509 = vmax.f32 %v348, 0.0
    %v510 = vmax.f32 %v351, 0.0
    %v511 = vmax.f32 %v354, 0.0
    %v512 = vmax.f32 %v357, 0.0
    %v513 = vmax.f32 %v360, 0.0
    %v514 = vmax.f32 %v363, 0.0
    %v515 = vmax.f32 %v366, 0.0
    %v516 = vmax.f32 %v369, 0.0
    %v517 = vmax.f32 %v372, 0.0
    %v518 = vmax.f32 %v375, 0.0
    %v519 = vmax.f32 %v378, 0.0
    %v520 = vmax.f32 %v381, 0.0
    %v521 = vmax.f32 %v384, 0.0
    %v522 = vmax.f32 %v387, 0.0
    %v523 = vmax.f32 %v390, 0.0
    %v524 = vmax.f32 %v393, 0.0
    %v525 = vmax.f32 %v396, 0.0
    %v526 = vmax.f32 %v399, 0.0
    %v527 = vmax.f32 %v402, 0.0
    %v528 = vmax.f32 %v405, 0.0
    %v529 = vmax.f32 %v408, 0.0
    %v530 = vmax.f32 %v411, 0.0
    %v531 = vmax.f32 %v414, 0.0
    %v532 = vmax.f32 %v417, 0.0
    %v533 = vmax.f32 %v420, 0.0
    %v534 = vmax.f32 %v423, 0.0
    %v535 = vmax.f32 %v426, 0.0
    %v536 = vmax.f32 %v429, 0.0
    %v537 = vmax.f32 %v432, 0.0
    %v538 = vmax.f32 %v435, 0.0
    %v539 = vmax.f32 %v438, 0.0
    %v540 = vmax.f32 %v441, 0.0
    %v541 = vmax.f32 %v444, 0.0
    %v542 = vmax.f32 %v447, 0.0
    %v543 = vmax.f32 %v450, 0.0
    %v544 = vmax.f32 %v453, 0.0
    %v545 = vmax.f32 %v456, 0.0
    %v546 = vmax.f32 %v459, 0.0
    %v547 = vmax.f32 %v462, 0.0
    %v548 = vmax.f32 %v465, 0.0
    %v549 = vmax.f32 %v468, 0.0
    %v550 = vmax.f32 %v471, 0.0
    %v551 = vmax.f32 %v474, 0.0
    %v552 = vmax.f32 %v477, 0.0
    %v553 = vmax.f32 %v480, 0.0
    %v554 = vmax.f32 %v483, 0.0
    %v555 = vmax.f32 %v486, 0.0
    %v556 = vmax.f32 %v489, 0.0
    %v557 = vmax.f32 %v492, 0.0
    %558 = vst [vmem:[#allocation2] sm:$0xff] %v494
    %559 = vst [vmem:[#allocation2 + $0x8] sm:$0xff] %v495
    %560 = vst [vmem:[#allocation2 + $0x10] sm:$0xff] %v496
    %561 = vst [vmem:[#allocation2 + $0x18] sm:$0xff] %v497
    %562 = vst [vmem:[#allocation2 + $0x20] sm:$0xff] %v498
    %563 = vst [vmem:[#allocation2 + $0x28] sm:$0xff] %v499
    %564 = vst [vmem:[#allocation2 + $0x30] sm:$0xff] %v500
    %565 = vst [vmem:[#allocation2 + $0x38] sm:$0xff] %v501
    %566 = vst [vmem:[#allocation2 + $0x40] sm:$0xff] %v502
    %567 = vst [vmem:[#allocation2 + $0x48] sm:$0xff] %v503
    %568 = vst [vmem:[#allocation2 + $0x50] sm:$0xff] %v504
    %569 = vst [vmem:[#allocation2 + $0x58] sm:$0xff] %v505
    %570 = vst [vmem:[#allocation2 + $0x60] sm:$0xff] %v506
    %571 = vst [vmem:[#allocation2 + $0x68] sm:$0xff] %v507
    %572 = vst [vmem:[#allocation2 + $0x70] sm:$0xff] %v508
    %573 = vst [vmem:[#allocation2 + $0x78] sm:$0xff] %v509
    %574 = vst [vmem:[#allocation2 + $0x80] sm:$0xff] %v510
    %575 = vst [vmem:[#allocation2 + $0x88] sm:$0xff] %v511
    %576 = vst [vmem:[#allocation2 + $0x90] sm:$0xff] %v512
    %577 = vst [vmem:[#allocation2 + $0x98] sm:$0xff] %v513
    %578 = vst [vmem:[#allocation2 + $0xa0] sm:$0xff] %v514
    %579 = vst [vmem:[#allocation2 + $0xa8] sm:$0xff] %v515
    %580 = vst [vmem:[#allocation2 + $0xb0] sm:$0xff] %v516
    %581 = vst [vmem:[#allocation2 + $0xb8] sm:$0xff] %v517
    %582 = vst [vmem:[#allocation2 + $0xc0] sm:$0xff] %v518
    %583 = vst [vmem:[#allocation2 + $0xc8] sm:$0xff] %v519
    %584 = vst [vmem:[#allocation2 + $0xd0] sm:$0xff] %v520
    %585 = vst [vmem:[#allocation2 + $0xd8] sm:$0xff] %v521
    %586 = vst [vmem:[#allocation2 + $0xe0] sm:$0xff] %v522
    %587 = vst [vmem:[#allocation2 + $0xe8] sm:$0xff] %v523
    %588 = vst [vmem:[#allocation2 + $0xf0] sm:$0xff] %v524
    %589 = vst [vmem:[#allocation2 + $0xf8] sm:$0xff] %v525
    %590 = vst [vmem:[#allocation2 + $0x100] sm:$0xff] %v526
    %591 = vst [vmem:[#allocation2 + $0x108] sm:$0xff] %v527
    %592 = vst [vmem:[#allocation2 + $0x110] sm:$0xff] %v528
    %593 = vst [vmem:[#allocation2 + $0x118] sm:$0xff] %v529
    %594 = vst [vmem:[#allocation2 + $0x120] sm:$0xff] %v530
    %595 = vst [vmem:[#allocation2 + $0x128] sm:$0xff] %v531
    %596 = vst [vmem:[#allocation2 + $0x130] sm:$0xff] %v532
    %597 = vst [vmem:[#allocation2 + $0x138] sm:$0xff] %v533
    %598 = vst [vmem:[#allocation2 + $0x140] sm:$0xff] %v534
    %599 = vst [vmem:[#allocation2 + $0x148] sm:$0xff] %v535
    %600 = vst [vmem:[#allocation2 + $0x150] sm:$0xff] %v536
    %601 = vst [vmem:[#allocation2 + $0x158] sm:$0xff] %v537
    %602 = vst [vmem:[#allocation2 + $0x160] sm:$0xff] %v538
    %603 = vst [vmem:[#allocation2 + $0x168] sm:$0xff] %v539
    %604 = vst [vmem:[#allocation2 + $0x170] sm:$0xff] %v540
    %605 = vst [vmem:[#allocation2 + $0x178] sm:$0xff] %v541
    %606 = vst [vmem:[#allocation2 + $0x180] sm:$0xff] %v542
    %607 = vst [vmem:[#allocation2 + $0x188] sm:$0xff] %v543
    %608 = vst [vmem:[#allocation2 + $0x190] sm:$0xff] %v544
    %609 = vst [vmem:[#allocation2 + $0x198] sm:$0xff] %v545
    %610 = vst [vmem:[#allocation2 + $0x1a0] sm:$0xff] %v546
    %611 = vst [vmem:[#allocation2 + $0x1a8] sm:$0xff] %v547
    %612 = vst [vmem:[#allocation2 + $0x1b0] sm:$0xff] %v548
    %613 = vst [vmem:[#allocation2 + $0x1b8] sm:$0xff] %v549
    %614 = vst [vmem:[#allocation2 + $0x1c0] sm:$0xff] %v550
    %615 = vst [vmem:[#allocation2 + $0x1c8] sm:$0xff] %v551
    %616 = vst [vmem:[#allocation2 + $0x1d0] sm:$0xff] %v552
    %617 = vst [vmem:[#allocation2 + $0x1d8] sm:$0xff] %v553
    %618 = vst [vmem:[#allocation2 + $0x1e0] sm:$0xff] %v554
    %619 = vst [vmem:[#allocation2 + $0x1e8] sm:$0xff] %v555
    %620 = vst [vmem:[#allocation2 + $0x1f0] sm:$0xff] %v556
    %621 = vst [vmem:[#allocation2 + $0x1f8] sm:$0xff] %v557
    // Predicated region
    $region14: #{tpu_custom_call.1} parent=1 // pred_check
      _
    $region15: #{tpu_custom_call.1} parent=1 // pred_check_branch
      %623 = sbr.rel (0) target = $region17
    $region16: #{tpu_custom_call.1} parent=1 // pred_region
      %625 = vsyncadd [#allocation3], 0
      %s626 = sshll.u32 [#allocation2], 4
      %s627 = int_to_ptr.vmem [resolvable:$true] %s626
      %s628 = sshll.u32 %s3, 4
      %s629 = int_to_ptr.hbm [resolvable:$true] %s628
      %634 = dma.vmem_to_hbm [thread:$0]  %s627, 8192, %s629, [#allocation3], 128, 128, 8
    $region17: #{tpu_custom_call.1} parent=1 // pred_fallthru
      _
    // Predicated region
    $region18: #{tpu_custom_call.1} parent=1 // pred_check
      _
    $region19: #{tpu_custom_call.1} parent=1 // pred_check_branch
      %636 = sbr.rel (0) target = $region21
    $region20: #{tpu_custom_call.1} parent=1 // pred_region
      %638 = dma.done [#allocation3], 8192
    $region21: #{tpu_custom_call.1} parent=1 // pred_fallthru
      _
    %639 = vsyncpa [#allocation3], 1

</llo_original>
